<compile_context>
chip_gen: v7x
topology: tpu7x:2x2x1
jax: 0.10.0
libtpu: 0.0.40
codegen_flags: <defaults>
</compile_context>

<pallas_src>
import jax
import jax.numpy as jnp
from jax import lax
from jax.experimental import pallas as pl
from jax.experimental.pallas import tpu as pltpu

ALPHA = 1.0
GAMMA = 2.0  # implemented as an explicit square inside the kernel


def _round_up(x, m):
    return ((x + m - 1) // m) * m


def _pick_tile_rows(n, c, itemsize, *, target_bytes=8 << 20, buffer_budget=12 << 20):
    """Row-tile size targeting ~target_bytes per logits VMEM buffer.

    Uses the real VMEM layout (last dim lane-padded to 128) so the estimate is
    correct for small C.  Caps the tile so double-buffered logits stay within
    ~2*buffer_budget (fits v7x's 32 MiB scoped VMEM default with headroom).
    Result is a multiple of 8 sublanes, or the full N when N < 8.
    """
    c_padded = max(128, _round_up(c, 128))
    bytes_per_row = c_padded * itemsize
    rows = min(target_bytes, buffer_budget) // max(1, bytes_per_row)
    rows = max(8, (int(rows) // 8) * 8)
    if n < 8:
        return n                        # block equals full array dim (allowed)
    rows = min(rows, (n // 8) * 8)      # ragged last tile handled by masking
    return max(rows, 8)


def _make_kernel(n_rows_total, tile_rows, num_tiles, needs_mask):
    def _tile_loss_sum(x, t, tile_idx, mask_rows):
        tr, c = x.shape
        valid = None
        if mask_rows:
            row_ids = tile_idx * tile_rows + lax.broadcasted_iota(jnp.int32, (tr, 1), 0)
            valid = row_ids < n_rows_total                # (tr, 1) bool
            # Zero padded rows BEFORE any exp/log so garbage VMEM can't make NaN.
            x = jnp.where(valid, x, 0.0)

        # Numerically stable log-sum-exp per row.
        m = jnp.max(x, axis=-1, keepdims=True)                               # (tr, 1)
        lse = m + jnp.log(jnp.sum(jnp.exp(x - m), axis=-1, keepdims=True))   # (tr, 1)

        # Target-class logit via masked select (cheaper than one-hot * x).
        class_ids = lax.broadcasted_iota(jnp.int32, (tr, c), 1)              # (tr, C)
        tgt_logit = jnp.sum(jnp.where(class_ids == t, x, 0.0),
                            axis=-1, keepdims=True)                          # (tr, 1)

        # Focal loss: ce clamped >= 0; gamma=2 as an explicit square (no pow).
        ce = jnp.maximum(lse - tgt_logit, 0.0)
        pt = jnp.exp(-ce)
        w = 1.0 - pt
        focal = ALPHA * w * w * ce                                           # (tr, 1)

        if mask_rows:
            focal = jnp.where(valid, focal, 0.0)
        return jnp.sum(focal)

    def focal_loss_kernel(logits_ref, targets_ref, partial_ref):
        i = pl.program_id(0)
        x = logits_ref[...].astype(jnp.float32)   # (tile_rows, C)
        t = targets_ref[...]                      # (tile_rows, 1) int32

        if not needs_mask:
            s = _tile_loss_sum(x, t, i, mask_rows=False)
            partial_ref[...] = jnp.full(partial_ref.shape, s, jnp.float32)
        else:
            # Only the ragged last tile pays for the per-element padding mask.
            @pl.when(i < num_tiles - 1)
            def _():
                s = _tile_loss_sum(x, t, i, mask_rows=False)
                partial_ref[...] = jnp.full(partial_ref.shape, s, jnp.float32)

            @pl.when(i == num_tiles - 1)
            def _():
                s = _tile_loss_sum(x, t, i, mask_rows=True)
                partial_ref[...] = jnp.full(partial_ref.shape, s, jnp.float32)

    return focal_loss_kernel


def focal_loss(logits, targets, *, tile_rows=None, vmem_limit_bytes=None):
    """logits: (N, C) float (f32 or bf16); targets: (N,) int class ids -> scalar mean focal loss."""
    n, c = logits.shape
    itemsize = jnp.dtype(logits.dtype).itemsize
    targets2d = targets.astype(jnp.int32).reshape(n, 1)

    if tile_rows is None:
        tile_rows = _pick_tile_rows(n, c, itemsize)
    num_tiles = int(pl.cdiv(n, tile_rows))

    # v7x megacore balance: prefer an even tile count when it's cheap to split.
    if num_tiles > 1 and num_tiles % 2 == 1 and tile_rows >= 16:
        alt = _round_up(int(pl.cdiv(n, num_tiles + 1)), 8)
        if alt >= 8 and int(pl.cdiv(n, alt)) % 2 == 0:
            tile_rows = alt
            num_tiles = int(pl.cdiv(n, alt))

    needs_mask = (n % tile_rows) != 0
    kernel = _make_kernel(n, tile_rows, num_tiles, needs_mask)

    # If even the minimum 8-row tile overflows the default scoped VMEM
    # (huge C before the flash-LSE rework), raise the limit explicitly.
    c_padded = max(128, _round_up(c, 128))
    dbuf_bytes = 2 * tile_rows * c_padded * itemsize + 2 * tile_rows * 128 * 4 + (1 << 20)
    if vmem_limit_bytes is None and dbuf_bytes > (30 << 20):
        vmem_limit_bytes = int(min(dbuf_bytes + (4 << 20), 64 << 20))

    cost = pl.CostEstimate(
        flops=6 * n * c,
        transcendentals=n * c + 2 * n,
        bytes_accessed=n * c * itemsize + n * 4 + num_tiles * 8 * 128 * 4,
    )

    partial = pl.pallas_call(
        kernel,
        out_shape=jax.ShapeDtypeStruct((num_tiles, 8, 128), jnp.float32),
        grid=(num_tiles,),
        in_specs=[
            pl.BlockSpec((tile_rows, c), lambda i: (i, 0)),
            pl.BlockSpec((tile_rows, 1), lambda i: (i, 0)),
        ],
        out_specs=pl.BlockSpec((1, 8, 128), lambda i: (i, 0, 0)),
        compiler_params=pltpu.CompilerParams(
            dimension_semantics=("parallel",),
            vmem_limit_bytes=vmem_limit_bytes,
        ),
        cost_estimate=cost,
    )(logits, targets2d)

    # Per-tile partial sums live in [:, 0, 0]; divide by the TRUE N ('mean').
    return jnp.sum(partial[:, 0, 0]) / n


def focal_loss_ref(logits, targets):
    # Pure-JAX reference (matches the PyTorch module with alpha=1, gamma=2, mean).
    logp = jax.nn.log_softmax(logits.astype(jnp.float32), axis=-1)
    ce = -jnp.take_along_axis(logp, targets[:, None], axis=-1)[:, 0]
    pt = jnp.exp(-ce)
    return jnp.mean(ALPHA * (1.0 - pt) ** GAMMA * ce)


if __name__ == "__main__":
    key = jax.random.PRNGKey(0)
    k1, k2 = jax.random.split(key)

    # Case 1: N=20, C=16 -> tile_rows=16, 2 tiles, RAGGED last tile (mask path).
    N, C = 20, 16
    logits = jax.random.normal(k1, (N, C), dtype=jnp.float32)
    targets = jax.random.randint(k2, (N,), 0, C, dtype=jnp.int32)

    loss = focal_loss(logits, targets)
    jax.block_until_ready(loss)
    ref = focal_loss_ref(logits, targets)
    assert jnp.allclose(loss, ref, rtol=1e-5, atol=1e-5), (loss, ref)

    # Case 2: exact tiling (N=16, tile_rows=8 -> 2 full tiles, no-mask path).
    loss2 = focal_loss(logits[:16], targets[:16], tile_rows=8)
    jax.block_until_ready(loss2)
    ref2 = focal_loss_ref(logits[:16], targets[:16])
    assert jnp.allclose(loss2, ref2, rtol=1e-5, atol=1e-5), (loss2, ref2)

    print("KERNEL_OK")
</pallas_src>

<mosaic_0001>
module attributes {stable_mosaic.version = 11 : i64} {
  func.func @focal_loss_kernel(%arg0: i32, %arg1: memref<16x16xf32, #tpu.memory_space<vmem>>, %arg2: memref<16x1xi32, #tpu.memory_space<vmem>>, %arg3: memref<1x8x128xf32, #tpu.memory_space<vmem>>) attributes {dimension_semantics = [#tpu.dimension_semantics<parallel>], iteration_bounds = array<i64: 2>, scalar_prefetch = 0 : i64, scratch_operands = 0 : i64, tpu.core_type = #tpu.core_type<tc>, window_params = [{transform_indices = @transform_0, window_bounds = array<i64: 16, 16>}, {transform_indices = @transform_1, window_bounds = array<i64: 16, 1>}, {transform_indices = @transform_2, window_bounds = array<i64: 1, 8, 128>}]} {
    %c0 = arith.constant 0 : index
    %c0_0 = arith.constant 0 : index
    %0 = vector.load %arg1[%c0, %c0_0] : memref<16x16xf32, #tpu.memory_space<vmem>>, vector<16x16xf32>
    %c0_1 = arith.constant 0 : index
    %c0_2 = arith.constant 0 : index
    %1 = vector.load %arg2[%c0_1, %c0_2] : memref<16x1xi32, #tpu.memory_space<vmem>>, vector<16x1xi32>
    %c1_i32 = arith.constant 1 : i32
    %2 = arith.cmpi slt, %arg0, %c1_i32 : i32
    %3 = arith.extui %2 : i1 to i32
    %c0_i32 = arith.constant 0 : i32
    %4 = arith.cmpi ne, %3, %c0_i32 : i32
    scf.if %4 {
      %cst = arith.constant dense<0xFF800000> : vector<16xf32>
      %8 = vector.multi_reduction <maximumf>, %0, %cst [1] : vector<16x16xf32> to vector<16xf32>
      %9 = vector.shape_cast %8 : vector<16xf32> to vector<16x1xf32>
      %10 = vector.broadcast %9 : vector<16x1xf32> to vector<16x16xf32>
      %11 = arith.subf %0, %10 : vector<16x16xf32>
      %12 = math.exp %11 : vector<16x16xf32>
      %cst_5 = arith.constant dense<0.000000e+00> : vector<16xf32>
      %13 = vector.multi_reduction <add>, %12, %cst_5 [1] : vector<16x16xf32> to vector<16xf32>
      %14 = vector.shape_cast %13 : vector<16xf32> to vector<16x1xf32>
      %15 = math.log %14 : vector<16x1xf32>
      %16 = arith.addf %9, %15 : vector<16x1xf32>
      %17 = tpu.iota {dimensions = array<i32: 1>} : vector<16x16xi32>
      %18 = vector.broadcast %1 : vector<16x1xi32> to vector<16x16xi32>
      %19 = arith.cmpi eq, %17, %18 : vector<16x16xi32>
      %cst_6 = arith.constant 0.000000e+00 : f32
      %20 = vector.broadcast %cst_6 : f32 to vector<16x16xf32>
      %21 = arith.select %19, %0, %20 : vector<16x16xi1>, vector<16x16xf32>
      %cst_7 = arith.constant dense<0.000000e+00> : vector<16xf32>
      %22 = vector.multi_reduction <add>, %21, %cst_7 [1] : vector<16x16xf32> to vector<16xf32>
      %23 = vector.shape_cast %22 : vector<16xf32> to vector<16x1xf32>
      %24 = arith.subf %16, %23 : vector<16x1xf32>
      %cst_8 = arith.constant 0.000000e+00 : f32
      %25 = vector.broadcast %cst_8 : f32 to vector<16x1xf32>
      %26 = arith.maximumf %24, %25 : vector<16x1xf32>
      %cst_9 = arith.constant 0.000000e+00 : f32
      %27 = vector.broadcast %cst_9 : f32 to vector<16x1xf32>
      %28 = arith.subf %27, %26 : vector<16x1xf32>
      %29 = math.exp %28 : vector<16x1xf32>
      %cst_10 = arith.constant 1.000000e+00 : f32
      %30 = vector.broadcast %cst_10 : f32 to vector<16x1xf32>
      %31 = arith.subf %30, %29 : vector<16x1xf32>
      %cst_11 = arith.constant 1.000000e+00 : f32
      %32 = vector.broadcast %cst_11 : f32 to vector<16x1xf32>
      %33 = arith.mulf %32, %31 : vector<16x1xf32>
      %34 = arith.mulf %33, %31 : vector<16x1xf32>
      %35 = arith.mulf %34, %26 : vector<16x1xf32>
      %36 = vector.shape_cast %35 : vector<16x1xf32> to vector<1x16x1xf32>
      %cst_12 = arith.constant dense<0.000000e+00> : vector<1xf32>
      %37 = vector.multi_reduction <add>, %36, %cst_12 [1, 2] : vector<1x16x1xf32> to vector<1xf32>
      %38 = vector.shape_cast %37 : vector<1xf32> to vector<1x1x1xf32>
      %39 = vector.extract %38[0, 0, 0] : f32 from vector<1x1x1xf32>
      %40 = vector.broadcast %39 : f32 to vector<1x8x128xf32>
      %c0_13 = arith.constant 0 : index
      %c0_14 = arith.constant 0 : index
      %c0_15 = arith.constant 0 : index
      %41 = vector.load %arg3[%c0_13, %c0_14, %c0_15] : memref<1x8x128xf32, #tpu.memory_space<vmem>>, vector<1x8x128xf32>
      tpu.vector_store %arg3[%c0_13, %c0_14, %c0_15], %40 {strides = array<i32>} : memref<1x8x128xf32, #tpu.memory_space<vmem>>, vector<1x8x128xf32>,
    } else {
    }
    %c1_i32_3 = arith.constant 1 : i32
    %5 = arith.cmpi eq, %arg0, %c1_i32_3 : i32
    %6 = arith.extui %5 : i1 to i32
    %c0_i32_4 = arith.constant 0 : i32
    %7 = arith.cmpi ne, %6, %c0_i32_4 : i32
    scf.if %7 {
      %c16_i32 = arith.constant 16 : i32
      %8 = arith.muli %arg0, %c16_i32 : i32
      %9 = tpu.iota {dimensions = array<i32: 0>} : vector<16x1xi32>
      %10 = vector.broadcast %8 : i32 to vector<16x1xi32>
      %11 = arith.addi %10, %9 : vector<16x1xi32>
      %c20_i32 = arith.constant 20 : i32
      %12 = vector.broadcast %c20_i32 : i32 to vector<16x1xi32>
      %13 = arith.cmpi slt, %11, %12 : vector<16x1xi32>
      %cst = arith.constant 0.000000e+00 : f32
      %14 = vector.shape_cast %13 : vector<16x1xi1> to vector<16x1xi1>
      %15 = vector.broadcast %14 : vector<16x1xi1> to vector<16x16xi1>
      %16 = vector.broadcast %cst : f32 to vector<16x16xf32>
      %17 = arith.select %15, %0, %16 : vector<16x16xi1>, vector<16x16xf32>
      %cst_5 = arith.constant dense<0xFF800000> : vector<16xf32>
      %18 = vector.multi_reduction <maximumf>, %17, %cst_5 [1] : vector<16x16xf32> to vector<16xf32>
      %19 = vector.shape_cast %18 : vector<16xf32> to vector<16x1xf32>
      %20 = vector.broadcast %19 : vector<16x1xf32> to vector<16x16xf32>
      %21 = arith.subf %17, %20 : vector<16x16xf32>
      %22 = math.exp %21 : vector<16x16xf32>
      %cst_6 = arith.constant dense<0.000000e+00> : vector<16xf32>
      %23 = vector.multi_reduction <add>, %22, %cst_6 [1] : vector<16x16xf32> to vector<16xf32>
      %24 = vector.shape_cast %23 : vector<16xf32> to vector<16x1xf32>
      %25 = math.log %24 : vector<16x1xf32>
      %26 = arith.addf %19, %25 : vector<16x1xf32>
      %27 = tpu.iota {dimensions = array<i32: 1>} : vector<16x16xi32>
      %28 = vector.broadcast %1 : vector<16x1xi32> to vector<16x16xi32>
      %29 = arith.cmpi eq, %27, %28 : vector<16x16xi32>
      %cst_7 = arith.constant 0.000000e+00 : f32
      %30 = vector.broadcast %cst_7 : f32 to vector<16x16xf32>
      %31 = arith.select %29, %17, %30 : vector<16x16xi1>, vector<16x16xf32>
      %cst_8 = arith.constant dense<0.000000e+00> : vector<16xf32>
      %32 = vector.multi_reduction <add>, %31, %cst_8 [1] : vector<16x16xf32> to vector<16xf32>
      %33 = vector.shape_cast %32 : vector<16xf32> to vector<16x1xf32>
      %34 = arith.subf %26, %33 : vector<16x1xf32>
      %cst_9 = arith.constant 0.000000e+00 : f32
      %35 = vector.broadcast %cst_9 : f32 to vector<16x1xf32>
      %36 = arith.maximumf %34, %35 : vector<16x1xf32>
      %cst_10 = arith.constant 0.000000e+00 : f32
      %37 = vector.broadcast %cst_10 : f32 to vector<16x1xf32>
      %38 = arith.subf %37, %36 : vector<16x1xf32>
      %39 = math.exp %38 : vector<16x1xf32>
      %cst_11 = arith.constant 1.000000e+00 : f32
      %40 = vector.broadcast %cst_11 : f32 to vector<16x1xf32>
      %41 = arith.subf %40, %39 : vector<16x1xf32>
      %cst_12 = arith.constant 1.000000e+00 : f32
      %42 = vector.broadcast %cst_12 : f32 to vector<16x1xf32>
      %43 = arith.mulf %42, %41 : vector<16x1xf32>
      %44 = arith.mulf %43, %41 : vector<16x1xf32>
      %45 = arith.mulf %44, %36 : vector<16x1xf32>
      %cst_13 = arith.constant 0.000000e+00 : f32
      %46 = vector.broadcast %cst_13 : f32 to vector<16x1xf32>
      %47 = arith.select %13, %45, %46 : vector<16x1xi1>, vector<16x1xf32>
      %48 = vector.shape_cast %47 : vector<16x1xf32> to vector<1x16x1xf32>
      %cst_14 = arith.constant dense<0.000000e+00> : vector<1xf32>
      %49 = vector.multi_reduction <add>, %48, %cst_14 [1, 2] : vector<1x16x1xf32> to vector<1xf32>
      %50 = vector.shape_cast %49 : vector<1xf32> to vector<1x1x1xf32>
      %51 = vector.extract %50[0, 0, 0] : f32 from vector<1x1x1xf32>
      %52 = vector.broadcast %51 : f32 to vector<1x8x128xf32>
      %c0_15 = arith.constant 0 : index
      %c0_16 = arith.constant 0 : index
      %c0_17 = arith.constant 0 : index
      %53 = vector.load %arg3[%c0_15, %c0_16, %c0_17] : memref<1x8x128xf32, #tpu.memory_space<vmem>>, vector<1x8x128xf32>
      tpu.vector_store %arg3[%c0_15, %c0_16, %c0_17], %52 {strides = array<i32>} : memref<1x8x128xf32, #tpu.memory_space<vmem>>, vector<1x8x128xf32>,
    } else {
    }
    return
  }
  func.func @transform_0(%arg0: i32) -> (i32, i32) {
    %c0_i32 = arith.constant 0 : i32
    %c0_i32_0 = arith.constant 0 : i32
    return %arg0, %c0_i32 : i32, i32
  }
  func.func @transform_1(%arg0: i32) -> (i32, i32) {
    %c0_i32 = arith.constant 0 : i32
    %c0_i32_0 = arith.constant 0 : i32
    return %arg0, %c0_i32 : i32, i32
  }
  func.func @transform_2(%arg0: i32) -> (i32, i32, i32) {
    %c0_i32 = arith.constant 0 : i32
    %c0_i32_0 = arith.constant 0 : i32
    %c0_i32_1 = arith.constant 0 : i32
    return %arg0, %c0_i32, %c0_i32_0 : i32, i32, i32
  }
}

</mosaic_0001>

<llo_original>
// kernel: tpu_custom_call.1
$region0: #{tpu_custom_call.1}
  #allocation0 [shape = 'u32[]', space=smem, size = 0x4, offset = 0x4, fixed_abs, tag = 'smem constant byte address 0x4 - core index']
  #allocation1 [shape = 'u32[144,128]{1,0:T(1,128)}', space=vmem, size = 0x12000, scoped, tag = 'internal scratch']
  %s0 = inlined_call_operand.vmem [shape: f32[20,16], index: 0, kind: input, shape index: {}]
  %s1 = inlined_call_operand.vmem [shape: s32[20,1], index: 1, kind: input, shape index: {}]
  %s2 = inlined_call_operand.hbm [shape: f32[2,8,128], index: 2, kind: output, shape index: {}]
  %s3 = sld [smem:[#allocation0]]
  $region49: #{tpu_custom_call.1} parent=0
    _
  %s5 = ssub.s32 1, %s3
  %s6 = scalar_select 0, %s5, %s3
  $region1: #{tpu_custom_call.1} parent=0
    #allocation2 [shape = 'u8[8192]{0}', space=vmem, size = 0x2000, scoped, tag = 'output window, operand 0']
    #allocation3 [shape = 's32[2]{0}', space=sflag, size = 0x8, scoped, tag = 'scoped memory for tpu_custom_call.1']
    %7 = vsyncpa [#allocation3], 0
    %s8 = scalar_lea.sflag [#allocation3], 1
    %9 = vsyncpa %s8, 0
    loop: start=0, step=1, limit=4
    $region2: #{tpu_custom_call.1} parent=1 // loop_pre_header
      _
    $region3: #{tpu_custom_call.1} parent=1 // loop_header
      %s11 = sphi 0, %s15
      %p12 = scmp.ge.s32.totalorder %s11, 4
      %s21 = sphi 0, %s23
      %s24 = sphi 0, %s21
      %s25 = sphi 0, %s24
      %s41 = sphi 0, %s25
      %s47 = sphi 0, %s49
      %s50 = sphi 0, %s47
      %s51 = sphi 0, %s50
      %s67 = sphi 0, %s51
      %s73 = sphi 0, %s75
      %s76 = sphi 0, %s73
      %s77 = sphi 0, %s76
      %s93 = sphi 0, %s77
    $region4: #{tpu_custom_call.1} parent=1 // loop_header_branch
      %14 = sbr.rel (%p12) target = $region8
    $region5: #{tpu_custom_call.1} parent=1 // loop_body
      %s16 = ssub.s32 %s11, 1
      %s17 = ssub.s32 %s11, 2
      %s18 = sadd.s32 %s11, 1
      %s19 = ssub.s32 %s11, %s18
      %p20 = scmp.eq.s32.totalorder %s19, 0
      %s22 = sadd.s32 %s21, 1
      %s23 = scalar_select %p20, %s21, %s22
      %p26 = pneg %p20
      %p27 = scmp.eq.s32.totalorder %s11, 1
      %p28 = por %p26, %p27
      %p29 = scmp.ne.s32.totalorder %s21, %s24
      %p30 = scmp.eq.s32.totalorder %s11, 0
      %p31 = por %p29, %p30
      %p32 = scmp.ne.s32.totalorder %s21, %s24
      %p33 = scmp.eq.s32.totalorder %s16, 1
      %p34 = por %p32, %p33
      %p35 = scmp.ne.s32.totalorder %s24, %s25
      %p36 = scmp.eq.s32.totalorder %s16, 0
      %p37 = por %p35, %p36
      %p38 = scmp.ne.s32.totalorder %s24, %s25
      %p39 = scmp.eq.s32.totalorder %s17, 1
      %p40 = por %p38, %p39
      %p42 = scmp.ne.s32.totalorder %s25, %s41
      %p43 = scmp.eq.s32.totalorder %s17, 0
      %p44 = por %p42, %p43
      %s45 = ssub.s32 %s11, %s18
      %p46 = scmp.eq.s32.totalorder %s45, 0
      %s48 = sadd.s32 %s47, 1
      %s49 = scalar_select %p46, %s47, %s48
      %p52 = pneg %p46
      %p53 = scmp.eq.s32.totalorder %s11, 1
      %p54 = por %p52, %p53
      %p55 = scmp.ne.s32.totalorder %s47, %s50
      %p56 = scmp.eq.s32.totalorder %s11, 0
      %p57 = por %p55, %p56
      %p58 = scmp.ne.s32.totalorder %s47, %s50
      %p59 = scmp.eq.s32.totalorder %s16, 1
      %p60 = por %p58, %p59
      %p61 = scmp.ne.s32.totalorder %s50, %s51
      %p62 = scmp.eq.s32.totalorder %s16, 0
      %p63 = por %p61, %p62
      %p64 = scmp.ne.s32.totalorder %s50, %s51
      %p65 = scmp.eq.s32.totalorder %s17, 1
      %p66 = por %p64, %p65
      %p68 = scmp.ne.s32.totalorder %s51, %s67
      %p69 = scmp.eq.s32.totalorder %s17, 0
      %p70 = por %p68, %p69
      %s71 = ssub.s32 %s11, %s18
      %p72 = scmp.eq.s32.totalorder %s71, 0
      %s74 = sadd.s32 %s73, 1
      %s75 = scalar_select %p72, %s73, %s74
      %p78 = pneg %p72
      %p79 = scmp.eq.s32.totalorder %s11, 1
      %p80 = por %p78, %p79
      %p81 = scmp.ne.s32.totalorder %s73, %s76
      %p82 = scmp.eq.s32.totalorder %s11, 0
      %p83 = por %p81, %p82
      %p84 = scmp.ne.s32.totalorder %s73, %s76
      %p85 = scmp.eq.s32.totalorder %s16, 1
      %p86 = por %p84, %p85
      %p87 = scmp.ne.s32.totalorder %s76, %s77
      %p88 = scmp.eq.s32.totalorder %s16, 0
      %p89 = por %p87, %p88
      %p90 = scmp.ne.s32.totalorder %s76, %s77
      %p91 = scmp.eq.s32.totalorder %s17, 1
      %p92 = por %p90, %p91
      %p94 = scmp.ne.s32.totalorder %s77, %s93
      %p95 = scmp.eq.s32.totalorder %s17, 0
      %p96 = por %p94, %p95
      %p97 = scmp.le.s32.totalorder 1, %s11
      %p98 = scmp.lt.s32.totalorder %s11, 3
      %p99 = pnand %p97, %p98
      %p100 = pneg %p99
      // Predicated region
      $region9: #{tpu_custom_call.1} parent=5 // pred_check
        _
      $region10: #{tpu_custom_call.1} parent=5 // pred_check_branch
        %102 = sbr.rel (%p99) target = $region12
      $region11: #{tpu_custom_call.1} parent=5 // pred_region
        %s103 = ssub.s32 %s11, 1
      $region12: #{tpu_custom_call.1} parent=5 // pred_fallthru
        _
      %p104 = scmp.lt.s32.totalorder %s11, 2
      // Predicated region
      $region13: #{tpu_custom_call.1} parent=5 // pred_check
        %p105 = pneg %p104
      $region14: #{tpu_custom_call.1} parent=5 // pred_check_branch
        %107 = sbr.rel (%p105) target = $region16
      $region15: #{tpu_custom_call.1} parent=5 // pred_region
        // Predicated region
        $region17: #{tpu_custom_call.1} parent=15 // pred_check
          %p108 = pneg %p31
        $region18: #{tpu_custom_call.1} parent=15 // pred_check_branch
          %110 = sbr.rel (%p108) target = $region20
        $region19: #{tpu_custom_call.1} parent=15 // pred_region
          %s111 = smul.u32 2, %s11
          %s112 = ssub.s32 3, %s111
          %p113 = scmp.lt.s32.totalorder %s112, 2
          %s114 = scalar_select %p113, %s112, 2
          %s115 = smul.u32 128, %s114
          %p116 = scmp.lt.s32.totalorder %s111, 2
          %s117 = scalar_select %p116, %s111, 2
          %s118 = smul.addr %s117, 8
          %s119 = scalar_lea.vmem %s0, %s118
          %s120 = smul.u32 2, %s11
          %s121 = ssub.s32 3, %s120
          %p122 = scmp.lt.s32.totalorder %s121, 2
          %s123 = scalar_select %p122, %s121, 2
          %s124 = smul.u32 128, %s123
        $region20: #{tpu_custom_call.1} parent=15 // pred_fallthru
          _
        // Predicated region
        $region21: #{tpu_custom_call.1} parent=15 // pred_check
          %p125 = pneg %p57
        $region22: #{tpu_custom_call.1} parent=15 // pred_check_branch
          %127 = sbr.rel (%p125) target = $region24
        $region23: #{tpu_custom_call.1} parent=15 // pred_region
          %s128 = smul.u32 2, %s11
          %s129 = ssub.s32 3, %s128
          %p130 = scmp.lt.s32.totalorder %s129, 2
          %s131 = scalar_select %p130, %s129, 2
          %s132 = smul.u32 128, %s131
          %p133 = scmp.lt.s32.totalorder %s128, 2
          %s134 = scalar_select %p133, %s128, 2
          %s135 = smul.addr %s134, 8
          %s136 = scalar_lea.vmem %s1, %s135
          %s137 = smul.u32 2, %s11
          %s138 = ssub.s32 3, %s137
          %p139 = scmp.lt.s32.totalorder %s138, 2
          %s140 = scalar_select %p139, %s138, 2
          %s141 = smul.u32 128, %s140
        $region24: #{tpu_custom_call.1} parent=15 // pred_fallthru
          _
      $region16: #{tpu_custom_call.1} parent=5 // pred_fallthru
        _
      %p142 = scmp.le.s32.totalorder 1, %s11
      %p143 = scmp.lt.s32.totalorder %s11, 3
      %p144 = pnand %p142, %p143
      %p145 = pneg %p144
      // Predicated region
      $region25: #{tpu_custom_call.1} parent=5 // pred_check
        _
      $region26: #{tpu_custom_call.1} parent=5 // pred_check_branch
        %147 = sbr.rel (%p144) target = $region28
      $region27: #{tpu_custom_call.1} parent=5 // pred_region
        %s148 = ssub.s32 %s11, 1
        %s149 = smul.u32 2, %s16
        %s150 = ssub.s32 3, %s149
        %p151 = scmp.lt.s32.totalorder %s150, 2
        %s152 = scalar_select %p151, %s150, 2
        %s153 = smul.u32 128, %s152
        %p154 = scmp.lt.s32.totalorder %s149, 2
        %s155 = scalar_select %p154, %s149, 2
        %s156 = smul.addr %s155, 8
        %s157 = scalar_lea.vmem %s0, %s156
        %p158 = pneg %p37
        %p159 = pneg %p34
        %s160 = smul.u32 2, %s16
        %s161 = ssub.s32 3, %s160
        %p162 = scmp.lt.s32.totalorder %s161, 2
        %s163 = scalar_select %p162, %s161, 2
        %s164 = smul.u32 128, %s163
        %p165 = scmp.lt.s32.totalorder %s160, 2
        %s166 = scalar_select %p165, %s160, 2
        %s167 = smul.addr %s166, 8
        %s168 = scalar_lea.vmem %s1, %s167
        %p169 = pneg %p63
        %p170 = pneg %p60
        %p171 = pneg %p89
        %p172 = pneg %p86
        %s173 = sand.u32 %s76, 1
        %s174 = scalar_lea.sflag [#allocation3], %s173
        %s175 = sand.u32 %s76, 1
        %s176 = smul.addr %s175, 8
        %s177 = scalar_lea.vmem [#allocation2], %s176
        %s178 = smul.u32 2, %s16
        %s179 = ssub.s32 3, %s178
        %p180 = scmp.lt.s32.totalorder %s179, 2
        %s181 = scalar_select %p180, %s179, 2
        %s182 = smul.u32 128, %s181
        %p183 = scmp.lt.s32.totalorder %s178, 2
        %s184 = scalar_select %p183, %s178, 2
        %s185 = smul.addr %s184, 8
        %s186 = scalar_lea.vmem %s0, %s185
        %s187 = smul.u32 2, %s16
        %s188 = ssub.s32 3, %s187
        %p189 = scmp.lt.s32.totalorder %s188, 2
        %s190 = scalar_select %p189, %s188, 2
        %s191 = smul.u32 128, %s190
        %s192 = smul.u32 2, %s16
        %s193 = ssub.s32 3, %s192
        %p194 = scmp.lt.s32.totalorder %s193, 2
        %s195 = scalar_select %p194, %s193, 2
        %s196 = smul.u32 128, %s195
        %p197 = scmp.lt.s32.totalorder %s192, 2
        %s198 = scalar_select %p197, %s192, 2
        %s199 = smul.addr %s198, 8
        %s200 = scalar_lea.vmem %s1, %s199
        %s201 = smul.u32 2, %s16
        %s202 = ssub.s32 3, %s201
        %p203 = scmp.lt.s32.totalorder %s202, 2
        %s204 = scalar_select %p203, %s202, 2
        %s205 = smul.u32 128, %s204
        %v206 = vld [vmem:[%s186] sm:$0xff]
        %v207 = vld [vmem:[%s186 + $0x8] sm:$0xff]
        %v208 = vld [vmem:[%s200] sm:$0xff]
        %v209 = vld [vmem:[%s200 + $0x8] sm:$0xff]
        %p210 = scmp.lt.s32.totalorder %s16, 1
        // Predicated region
        $region29: #{tpu_custom_call.1} parent=27 // pred_check
          %p211 = pneg %p210
        $region30: #{tpu_custom_call.1} parent=27 // pred_check_branch
          %213 = sbr.rel (%p211) target = $region32
        $region31: #{tpu_custom_call.1} parent=27 // pred_region
          %vm214 = vcmask 130048
          %v215 = vsel %vm214, %v206, -inf
          %216 = vmax.xlane.f32.xlu0 %v215
          %v217 = vpop.xlane.xlu0 %216
          %v218 = vsel %vm214, %v207, -inf
          %219 = vmax.xlane.f32.xlu0 %v218
          %v220 = vpop.xlane.xlu0 %219
          %v221 = vsub.f32 %v206, %v217
          %v222 = vsub.f32 %v207, %v220
          %v223 = vmul.f32 %v221, 1.442695
          %v224 = vpow.pop %v223
          %v225 = vmul.f32 %v222, 1.442695
          %v226 = vpow.pop %v225
          %v227 = vsel %vm214, %v224, 0.0
          %228 = vadd.xlane.f32.xlu0 %v227
          %v229 = vpop.xlane.xlu0 %228
          %v230 = vsel %vm214, %v226, 0.0
          %231 = vadd.xlane.f32.xlu0 %v230
          %v232 = vpop.xlane.xlu0 %231
          %v233 = vlog2.pop %v229
          %v234 = vmul.f32 %v233, 0.6931472
          %v235 = vlog2.pop %v232
          %v236 = vmul.f32 %v235, 0.6931472
          %v237 = vadd.f32 %v217, %v234
          %v238 = vadd.f32 %v220, %v236
          %v239 = vlaneseq
          %v240 = vand.u32 %v239, 127
          %241 = vset.pattern.permute.xlu0 0
          %242 = vperm.xlu0 %241, %v208
          %v243 = vpop.permute.xlu0 %242
          %244 = vset.pattern.permute.xlu0 0
          %245 = vperm.xlu0 %244, %v209
          %v246 = vpop.permute.xlu0 %245
          %vm247 = vcmp.eq.s32.totalorder %v240, %v243
          %vm248 = vcmp.eq.s32.totalorder %v240, %v246
          %v249 = vsel %vm247, %v206, 0.0
          %v250 = vsel %vm248, %v207, 0.0
          %v251 = vsel %vm214, %v249, 0.0
          %252 = vadd.xlane.f32.xlu0 %v251
          %v253 = vpop.xlane.xlu0 %252
          %v254 = vsel %vm214, %v250, 0.0
          %255 = vadd.xlane.f32.xlu0 %v254
          %v256 = vpop.xlane.xlu0 %255
          %v257 = vsub.f32 %v237, %v253
          %v258 = vsub.f32 %v238, %v256
          %v259 = vmax.f32 %v257, 0.0
          %v260 = vmax.f32 %v258, 0.0
          %v261 = vsub.f32 0.0, %v259
          %v262 = vsub.f32 0.0, %v260
          %v263 = vmul.f32 %v261, 1.442695
          %v264 = vpow.pop %v263
          %v265 = vmul.f32 %v262, 1.442695
          %v266 = vpow.pop %v265
          %v267 = vsub.f32 1.0, %v264
          %v268 = vsub.f32 1.0, %v266
          %v269 = vmul.f32 %v267, %v267
          %v270 = vmul.f32 %v268, %v268
          %v271 = vmul.f32 %v269, %v259
          %v272 = vmul.f32 %v270, %v260
          %vm273 = vcmask 7168
          %v274 = vsel %vm273, %v271, 0.0
          %v275 = vsel %vm273, %v272, 0.0
          %v276 = vadd.f32 %v274, %v275
          %277 = vadd.xlane.f32.xlu0 %v276
          %v278 = vpop.xlane.xlu0 %277
          %v279 = vrot.slane %v278, 4
          %v280 = vadd.f32 %v278, %v279
          %v281 = vrot.slane %v280, 2
          %v282 = vadd.f32 %v280, %v281
          %v283 = vrot.slane %v282, 1
          %v284 = vadd.f32 %v282, %v283
          %s285 = vtos %v284
          %v286 = vstv %s285
          %287 = vst [vmem:[%s177] sm:$0xff] %v286
        $region32: #{tpu_custom_call.1} parent=27 // pred_fallthru
          _
        %p288 = scmp.eq.s32.totalorder %s16, 1
        // Predicated region
        $region33: #{tpu_custom_call.1} parent=27 // pred_check
          %p289 = pneg %p288
        $region34: #{tpu_custom_call.1} parent=27 // pred_check_branch
          %291 = sbr.rel (%p289) target = $region36
        $region35: #{tpu_custom_call.1} parent=27 // pred_region
          %s292 = smul.u32 %s16, 16
          %v293 = vlaneseq
          %v294 = vshrl.u32 %v293, 7
          %v295 = vadd.s32 %v294, 8
          %v296 = vstv %s292
          %v297 = vadd.s32 %v296, %v294
          %v298 = vadd.s32 %v296, %v295
          %vm299 = vcmp.lt.s32.totalorder %v297, 20
          %vm300 = vcmp.lt.s32.totalorder %v298, 20
          %v301 = vsel %vm299, 1, 0
          %v302 = vsel %vm300, 1, 0
          %vm303 = vcmp.eq.s32.totalorder %v301, 1
          %vm304 = vcmp.eq.s32.totalorder %v302, 1
          %v305 = vsel %vm303, %v206, 0.0
          %v306 = vsel %vm304, %v207, 0.0
          %vm307 = vcmask 130048
          %v308 = vsel %vm307, %v305, -inf
          %309 = vmax.xlane.f32.xlu0 %v308
          %v310 = vpop.xlane.xlu0 %309
          %v311 = vsel %vm307, %v306, -inf
          %312 = vmax.xlane.f32.xlu0 %v311
          %v313 = vpop.xlane.xlu0 %312
          %v314 = vsub.f32 %v305, %v310
          %v315 = vsub.f32 %v306, %v313
          %v316 = vmul.f32 %v314, 1.442695
          %v317 = vpow.pop %v316
          %v318 = vmul.f32 %v315, 1.442695
          %v319 = vpow.pop %v318
          %v320 = vsel %vm307, %v317, 0.0
          %321 = vadd.xlane.f32.xlu0 %v320
          %v322 = vpop.xlane.xlu0 %321
          %v323 = vsel %vm307, %v319, 0.0
          %324 = vadd.xlane.f32.xlu0 %v323
          %v325 = vpop.xlane.xlu0 %324
          %v326 = vlog2.pop %v322
          %v327 = vmul.f32 %v326, 0.6931472
          %v328 = vlog2.pop %v325
          %v329 = vmul.f32 %v328, 0.6931472
          %v330 = vadd.f32 %v310, %v327
          %v331 = vadd.f32 %v313, %v329
          %v332 = vlaneseq
          %v333 = vand.u32 %v332, 127
          %334 = vset.pattern.permute.xlu0 0
          %335 = vperm.xlu0 %334, %v208
          %v336 = vpop.permute.xlu0 %335
          %337 = vset.pattern.permute.xlu0 0
          %338 = vperm.xlu0 %337, %v209
          %v339 = vpop.permute.xlu0 %338
          %vm340 = vcmp.eq.s32.totalorder %v333, %v336
          %vm341 = vcmp.eq.s32.totalorder %v333, %v339
          %v342 = vsel %vm340, %v305, 0.0
          %v343 = vsel %vm341, %v306, 0.0
          %v344 = vsel %vm307, %v342, 0.0
          %345 = vadd.xlane.f32.xlu0 %v344
          %v346 = vpop.xlane.xlu0 %345
          %v347 = vsel %vm307, %v343, 0.0
          %348 = vadd.xlane.f32.xlu0 %v347
          %v349 = vpop.xlane.xlu0 %348
          %v350 = vsub.f32 %v330, %v346
          %v351 = vsub.f32 %v331, %v349
          %v352 = vmax.f32 %v350, 0.0
          %v353 = vmax.f32 %v351, 0.0
          %v354 = vsub.f32 0.0, %v352
          %v355 = vsub.f32 0.0, %v353
          %v356 = vmul.f32 %v354, 1.442695
          %v357 = vpow.pop %v356
          %v358 = vmul.f32 %v355, 1.442695
          %v359 = vpow.pop %v358
          %v360 = vsub.f32 1.0, %v357
          %v361 = vsub.f32 1.0, %v359
          %v362 = vmul.f32 %v360, %v360
          %v363 = vmul.f32 %v361, %v361
          %v364 = vmul.f32 %v362, %v352
          %v365 = vmul.f32 %v363, %v353
          %v366 = vsel %vm299, %v364, 0.0
          %v367 = vsel %vm300, %v365, 0.0
          %vm368 = vcmask 7168
          %v369 = vsel %vm368, %v366, 0.0
          %v370 = vsel %vm368, %v367, 0.0
          %v371 = vadd.f32 %v369, %v370
          %372 = vadd.xlane.f32.xlu0 %v371
          %v373 = vpop.xlane.xlu0 %372
          %v374 = vrot.slane %v373, 4
          %v375 = vadd.f32 %v373, %v374
          %v376 = vrot.slane %v375, 2
          %v377 = vadd.f32 %v375, %v376
          %v378 = vrot.slane %v377, 1
          %v379 = vadd.f32 %v377, %v378
          %s380 = vtos %v379
          %v381 = vstv %s380
          %382 = vst [vmem:[%s177] sm:$0xff] %v381
        $region36: #{tpu_custom_call.1} parent=27 // pred_fallthru
          _
        %s383 = sand.u32 %s76, 1
        %s384 = scalar_lea.sflag [#allocation3], %s383
        %s385 = sand.u32 %s76, 1
        %s386 = smul.addr %s385, 8
        %s387 = scalar_lea.vmem [#allocation2], %s386
        // Predicated region
        $region37: #{tpu_custom_call.1} parent=27 // pred_check
          %p388 = pneg %p86
        $region38: #{tpu_custom_call.1} parent=27 // pred_check_branch
          %390 = sbr.rel (%p388) target = $region40
        $region39: #{tpu_custom_call.1} parent=27 // pred_region
          %s392 = ssub.s32 128, 128
          %393 = vsyncadd %s384, %s392
          %s394 = smul.addr %s16, 128
          %s395 = scalar_lea.hbm %s2, %s394
          %s397 = sshll.u32 %s387, 4
          %s398 = int_to_ptr.vmem [resolvable:$true] %s397
          %400 = dma.vmem_to_hbm [thread:$0]  %s398, 128, %s395, %s384
        $region40: #{tpu_custom_call.1} parent=27 // pred_fallthru
          _
      $region28: #{tpu_custom_call.1} parent=5 // pred_fallthru
        _
      %p401 = scmp.le.s32.totalorder 2, %s11
      // Predicated region
      $region41: #{tpu_custom_call.1} parent=5 // pred_check
        %p402 = pneg %p401
      $region42: #{tpu_custom_call.1} parent=5 // pred_check_branch
        %404 = sbr.rel (%p402) target = $region44
      $region43: #{tpu_custom_call.1} parent=5 // pred_region
        %s405 = ssub.s32 %s11, 2
        // Predicated region
        $region45: #{tpu_custom_call.1} parent=43 // pred_check
          %p406 = pneg %p92
        $region46: #{tpu_custom_call.1} parent=43 // pred_check_branch
          %408 = sbr.rel (%p406) target = $region48
        $region47: #{tpu_custom_call.1} parent=43 // pred_region
          %s409 = sand.u32 %s77, 1
          %s410 = scalar_lea.sflag [#allocation3], %s409
          %s411 = sand.u32 %s77, 1
          %s412 = smul.addr %s411, 8
          %s413 = scalar_lea.vmem [#allocation2], %s412
          %414 = dma.done %s410, 128
        $region48: #{tpu_custom_call.1} parent=43 // pred_fallthru
          _
      $region44: #{tpu_custom_call.1} parent=5 // pred_fallthru
        _
    $region6: #{tpu_custom_call.1} parent=1 // loop_footer
      %s15 = sadd.s32 1, %s11
    $region7: #{tpu_custom_call.1} parent=1 // loop_footer_branch
      %10 = sbr.rel target = $region3
    $region8: #{tpu_custom_call.1} parent=1 // loop_exit
      _
    %415 = vsyncpa [#allocation3], 1
    %s416 = scalar_lea.sflag [#allocation3], 1
    %417 = vsyncpa %s416, 1

</llo_original>
